<compile_context>
chip_gen: v7x
topology: tpu7x:2x2x1
jax: 0.10.0
libtpu: 0.0.40
codegen_flags: <defaults>
</compile_context>

<pallas_src>
import functools

import jax
import jax.numpy as jnp
from jax import lax
from jax.experimental import pallas as pl
from jax.experimental.pallas import tpu as pltpu

# ---- loss hyper-parameters (the "config") -----------------------------------
CE_EPSILON = 0.1      # cross_entropy.epsilon (label smoothing)
CE_SCALE   = 1.0
TRI_MARGIN = 0.3      # triplet.margin
TRI_EPS    = 1e-12    # triplet.eps
TRI_SCALE  = 1.0
# triplet.distance_mode = 'euclidean', hard_mining = True, norm_feature = False

_NEG      = -1e30     # "minus infinity" sentinel for masked (padded) logits
_MASK_NEG = -3.0e38   # excluded from hardest-positive max (squared dist >= 0)
_MASK_POS = 3.0e38    # excluded from hardest-negative min


def _round_up(x, m):
    return (x + m - 1) // m * m


def _wrap_loss_kernel(feat_ref, score_ref, tgt_col_ref, out_ref,
                      m_sc, l_sc, ssum_sc, st_sc, rank_sc,
                      *, c_total, b_total):
    k = pl.program_id(0)
    nk = pl.num_programs(0)

    # ------------- step 0: init + batch-hard TripletLoss ---------------------
    # feat is resident from step 0 (constant index_map), so the MXU gram and the
    # BxB hard mining overlap with the DMA stream of score tiles 1..nk-1.
    @pl.when(k == 0)
    def _():
        m_sc[...] = jnp.full_like(m_sc, _NEG)
        l_sc[...] = jnp.zeros_like(l_sc)
        ssum_sc[...] = jnp.zeros_like(ssum_sc)
        st_sc[...] = jnp.zeros_like(st_sc)

        feat = feat_ref[...]                                  # native dtype -> MXU
        featf = feat.astype(jnp.float32)
        gram = lax.dot_general(feat, feat, (((1,), (1,)), ((), ())),
                               preferred_element_type=jnp.float32)     # [B, B]
        feat2 = featf * featf                                 # [B, D]
        sq_col = jnp.sum(feat2, axis=-1, keepdims=True)       # [B, 1]

        bb = sq_col.shape[0]
        rows = lax.broadcasted_iota(jnp.int32, (bb, bb), 0)
        cols = lax.broadcasted_iota(jnp.int32, (bb, bb), 1)
        eye = rows == cols
        # [B,1] -> [1,B] via diagonal-select + sublane reduce: no transpose, no
        # MXU weight-load for a single row; values exactly symmetric with sq_col.
        sq_row = jnp.sum(jnp.where(eye, sq_col, 0.0), axis=0, keepdims=True)

        tgt_cf = tgt_col_ref[...].astype(jnp.float32)         # [B, 1]
        tgt_rf = jnp.sum(jnp.where(eye, tgt_cf, 0.0), axis=0, keepdims=True)
        same = tgt_cf == tgt_rf                               # [B, B]

        sqd = jnp.maximum(sq_col + sq_row - 2.0 * gram, 0.0)  # [B, B]
        # hard mining on squared distances; sqrt only on the 2*B winners
        sq_ap = jnp.max(jnp.where(same, sqd, _MASK_NEG), axis=-1, keepdims=True)
        sq_an = jnp.min(jnp.where(same, _MASK_POS, sqd), axis=-1, keepdims=True)
        dist_ap = jnp.sqrt(sq_ap + TRI_EPS)
        dist_an = jnp.sqrt(sq_an + TRI_EPS)
        trip = jnp.maximum(dist_ap - dist_an + TRI_MARGIN, 0.0)
        rank_sc[0] = jnp.sum(trip) / b_total                  # 'mean' reduction

    # ------------- streaming label-smoothed CrossEntropy over class tiles ----
    # ce_i = lse_i - (1-eps) * s[i, t_i] - (eps/C) * sum_c s[i, c]
    s = score_ref[...].astype(jnp.float32)                    # [B, TC]
    b, tc = s.shape
    col = k * tc + lax.broadcasted_iota(jnp.int32, (b, tc), 1)  # global class id
    valid = col < c_total                                     # mask partial last tile
    s_m = jnp.where(valid, s, _NEG)
    s_v = jnp.where(valid, s, 0.0)

    tile_max = jnp.max(s_m, axis=-1, keepdims=True)
    m_new = jnp.maximum(m_sc[...], tile_max)
    alpha = jnp.exp(m_sc[...] - m_new)
    p = jnp.exp(s_m - m_new)                                  # masked cols -> 0
    l_sc[...] = alpha * l_sc[...] + jnp.sum(p, axis=-1, keepdims=True)
    m_sc[...] = m_new
    ssum_sc[...] = ssum_sc[...] + jnp.sum(s_v, axis=-1, keepdims=True)
    tgt_c = tgt_col_ref[...]                                  # [B, 1] int32
    st_sc[...] = st_sc[...] + jnp.sum(
        jnp.where(col == tgt_c, s_v, 0.0), axis=-1, keepdims=True)

    # ------------- finalize: CE reduce + scalar combine -----------------------
    @pl.when(k == nk - 1)
    def _():
        lse = m_sc[...] + jnp.log(l_sc[...])                  # [B, 1]
        ce = (lse
              - (1.0 - CE_EPSILON) * st_sc[...]
              - (CE_EPSILON / c_total) * ssum_sc[...])
        id_loss = jnp.sum(ce) / b_total                       # 'mean' reduction
        ranking_loss = rank_sc[0]
        out_ref[0] = CE_SCALE * id_loss + TRI_SCALE * ranking_loss
        out_ref[1] = id_loss
        out_ref[2] = ranking_loss


def wrap_loss(feat, score, targets, *, score_buf_bytes=4 << 20):
    """feat [B,D], score [B,C], targets [B] int ->
       (losses scalar, stacked [id_loss, ranking_loss])"""
    B, D = feat.shape
    Bs, C = score.shape
    assert Bs == B
    tgt_col = targets.astype(jnp.int32).reshape(B, 1)

    # Class-tile width from a per-buffer VMEM budget (the pipeline double-buffers
    # the score stream), rounded to 128 lanes and capped at the lane-padded C.
    itemsize = score.dtype.itemsize
    tc = max(128, (score_buf_bytes // (B * itemsize)) // 128 * 128)
    tc = int(min(tc, _round_up(C, 128)))
    num_tiles = pl.cdiv(C, tc)        # last tile may be partial; masked in-kernel

    # Explicit VMEM limit so the same tiles are portable across v5e (16 MiB
    # scoped default), v6e (128 MiB physical) and v7x (64 MiB physical).
    feat_bytes = B * D * feat.dtype.itemsize
    finalize_bytes = 4 * B * B * 4 + 2 * B * D * 4            # gram/sqd/masks/feat2
    est = 2 * B * tc * itemsize + 2 * feat_bytes + finalize_bytes + (64 << 10)
    vmem_limit = int(min(max(2 * est, 16 << 20), 48 << 20))

    kernel = functools.partial(_wrap_loss_kernel, c_total=C, b_total=float(B))

    out = pl.pallas_call(
        kernel,
        out_shape=jax.ShapeDtypeStruct((3,), jnp.float32),
        grid_spec=pltpu.PrefetchScalarGridSpec(
            num_scalar_prefetch=0,
            grid=(num_tiles,),
            in_specs=[
                pl.BlockSpec((B, D), lambda k: (0, 0)),    # feat: resident across grid
                pl.BlockSpec((B, tc), lambda k: (0, k)),   # score: streamed over C
                pl.BlockSpec((B, 1), lambda k: (0, 0)),    # targets (column view)
            ],
            out_specs=pl.BlockSpec(memory_space=pltpu.MemorySpace.SMEM),
            scratch_shapes=[
                pltpu.VMEM((B, 1), jnp.float32),   # running max
                pltpu.VMEM((B, 1), jnp.float32),   # running sum of exp
                pltpu.VMEM((B, 1), jnp.float32),   # running sum of scores
                pltpu.VMEM((B, 1), jnp.float32),   # score at target
                pltpu.SMEM((1,), jnp.float32),     # stashed ranking loss (step 0)
            ]),
        compiler_params=pltpu.CompilerParams(
            dimension_semantics=("arbitrary",),
            vmem_limit_bytes=vmem_limit),
    )(feat, score, tgt_col)

    losses = out[0]
    id_and_ranking = out[1:3]   # analogue of torch.stack((id_loss, ranking_loss)).detach()
    return losses, id_and_ranking


def _reference(feat, score, targets):
    """Pure-JAX reference of the same math, for a sanity check."""
    B, C = score.shape
    logp = jax.nn.log_softmax(score.astype(jnp.float32), axis=-1)
    onehot = jax.nn.one_hot(targets, C, dtype=jnp.float32)
    smooth = (1.0 - CE_EPSILON) * onehot + CE_EPSILON / C
    id_loss = jnp.mean(-jnp.sum(smooth * logp, axis=-1))

    featf = feat.astype(jnp.float32)
    sq = jnp.sum(featf * featf, axis=-1)
    sqd = sq[:, None] + sq[None, :] - 2.0 * featf @ featf.T
    dist = jnp.sqrt(jnp.maximum(sqd, 0.0) + TRI_EPS)
    same = targets[:, None] == targets[None, :]
    dist_ap = jnp.max(jnp.where(same, dist, -1e9), axis=-1)
    dist_an = jnp.min(jnp.where(same, 1e9, dist), axis=-1)
    ranking_loss = jnp.mean(jnp.maximum(dist_ap - dist_an + TRI_MARGIN, 0.0))

    return CE_SCALE * id_loss + TRI_SCALE * ranking_loss, jnp.stack([id_loss, ranking_loss])


if __name__ == "__main__":
    key = jax.random.PRNGKey(0)
    k1, k2, k3 = jax.random.split(key, 3)

    B, D, C = 8, 32, 16
    feat    = jax.random.normal(k1, (B, D), dtype=jnp.float32)
    score   = jax.random.normal(k2, (B, C), dtype=jnp.float32)
    targets = jax.random.randint(k3, (B,), 0, 4, dtype=jnp.int32)  # few ids -> positives exist

    losses, parts = wrap_loss(feat, score, targets)
    losses = jax.block_until_ready(losses)
    parts = jax.block_until_ready(parts)
    ref_losses, ref_parts = _reference(feat, score, targets)
    assert jnp.allclose(losses, ref_losses, rtol=1e-4, atol=1e-5), (losses, ref_losses)
    assert jnp.allclose(parts, ref_parts, rtol=1e-4, atol=1e-5), (parts, ref_parts)

    # Second shape: C not a multiple of 128 with a tiny tile budget, forcing a
    # multi-tile streamed CE with a partial (in-kernel masked) last class tile.
    C2 = 300
    score2 = jax.random.normal(jax.random.PRNGKey(1), (B, C2), dtype=jnp.float32)
    losses2, parts2 = wrap_loss(feat, score2, targets, score_buf_bytes=4096)
    losses2 = jax.block_until_ready(losses2)
    parts2 = jax.block_until_ready(parts2)
    ref_losses2, ref_parts2 = _reference(feat, score2, targets)
    assert jnp.allclose(losses2, ref_losses2, rtol=1e-4, atol=1e-5), (losses2, ref_losses2)
    assert jnp.allclose(parts2, ref_parts2, rtol=1e-4, atol=1e-5), (parts2, ref_parts2)

    print("KERNEL_OK")
</pallas_src>

<mosaic_0001>
module attributes {stable_mosaic.version = 11 : i64} {
  func.func @_wrap_loss_kernel(%arg0: i32, %arg1: memref<8x32xf32, #tpu.memory_space<vmem>>, %arg2: memref<8x128xf32, #tpu.memory_space<vmem>>, %arg3: memref<8x1xi32, #tpu.memory_space<vmem>>, %arg4: memref<3xf32, #tpu.memory_space<smem>>, %arg5: memref<8x1xf32, #tpu.memory_space<vmem>>, %arg6: memref<8x1xf32, #tpu.memory_space<vmem>>, %arg7: memref<8x1xf32, #tpu.memory_space<vmem>>, %arg8: memref<8x1xf32, #tpu.memory_space<vmem>>, %arg9: memref<1xf32, #tpu.memory_space<smem>>) attributes {dimension_semantics = [#tpu.dimension_semantics<arbitrary>], iteration_bounds = array<i64: 1>, scalar_prefetch = 0 : i64, scratch_operands = 5 : i64, tpu.core_type = #tpu.core_type<tc>, window_params = [{pipeline_mode = #tpu.pipeline_mode<synchronous>, transform_indices = @transform_0, window_bounds = array<i64: 8, 32>}, {transform_indices = @transform_1, window_bounds = array<i64: 8, 128>}, {pipeline_mode = #tpu.pipeline_mode<synchronous>, transform_indices = @transform_2, window_bounds = array<i64: 8, 1>}, {transform_indices = @transform_3, window_bounds = array<i64: 3>}]} {
    %c0_i32 = arith.constant 0 : i32
    %0 = arith.cmpi eq, %arg0, %c0_i32 : i32
    %1 = arith.extui %0 : i1 to i32
    %c0_i32_0 = arith.constant 0 : i32
    %2 = arith.cmpi ne, %1, %c0_i32_0 : i32
    scf.if %2 {
      %cst_30 = arith.constant -1.000000e+30 : f32
      %49 = vector.broadcast %cst_30 : f32 to vector<8x1xf32>
      %c0_31 = arith.constant 0 : index
      %c0_32 = arith.constant 0 : index
      %50 = vector.load %arg5[%c0_31, %c0_32] : memref<8x1xf32, #tpu.memory_space<vmem>>, vector<8x1xf32>
      tpu.vector_store %arg5[%c0_31, %c0_32], %49 {strides = array<i32>} : memref<8x1xf32, #tpu.memory_space<vmem>>, vector<8x1xf32>,
      %cst_33 = arith.constant 0.000000e+00 : f32
      %51 = vector.broadcast %cst_33 : f32 to vector<8x1xf32>
      %c0_34 = arith.constant 0 : index
      %c0_35 = arith.constant 0 : index
      %52 = vector.load %arg6[%c0_34, %c0_35] : memref<8x1xf32, #tpu.memory_space<vmem>>, vector<8x1xf32>
      tpu.vector_store %arg6[%c0_34, %c0_35], %51 {strides = array<i32>} : memref<8x1xf32, #tpu.memory_space<vmem>>, vector<8x1xf32>,
      %cst_36 = arith.constant 0.000000e+00 : f32
      %53 = vector.broadcast %cst_36 : f32 to vector<8x1xf32>
      %c0_37 = arith.constant 0 : index
      %c0_38 = arith.constant 0 : index
      %54 = vector.load %arg7[%c0_37, %c0_38] : memref<8x1xf32, #tpu.memory_space<vmem>>, vector<8x1xf32>
      tpu.vector_store %arg7[%c0_37, %c0_38], %53 {strides = array<i32>} : memref<8x1xf32, #tpu.memory_space<vmem>>, vector<8x1xf32>,
      %cst_39 = arith.constant 0.000000e+00 : f32
      %55 = vector.broadcast %cst_39 : f32 to vector<8x1xf32>
      %c0_40 = arith.constant 0 : index
      %c0_41 = arith.constant 0 : index
      %56 = vector.load %arg8[%c0_40, %c0_41] : memref<8x1xf32, #tpu.memory_space<vmem>>, vector<8x1xf32>
      tpu.vector_store %arg8[%c0_40, %c0_41], %55 {strides = array<i32>} : memref<8x1xf32, #tpu.memory_space<vmem>>, vector<8x1xf32>,
      %c0_42 = arith.constant 0 : index
      %c0_43 = arith.constant 0 : index
      %57 = vector.load %arg1[%c0_42, %c0_43] : memref<8x32xf32, #tpu.memory_space<vmem>>, vector<8x32xf32>
      %cst_44 = arith.constant dense<0.000000e+00> : vector<8x8xf32>
      %58 = tpu.matmul %57, %57, %cst_44 {dimension_numbers = #tpu.dot_dimension_numbers<[1], [1], [0], [0], [0, 0, 1, 0], [], []>} : vector<8x32xf32>, vector<8x32xf32>, vector<8x8xf32> -> vector<8x8xf32>
      %59 = arith.mulf %57, %57 : vector<8x32xf32>
      %cst_45 = arith.constant dense<0.000000e+00> : vector<8xf32>
      %60 = vector.multi_reduction <add>, %59, %cst_45 [1] : vector<8x32xf32> to vector<8xf32>
      %61 = vector.shape_cast %60 : vector<8xf32> to vector<8x1xf32>
      %62 = tpu.iota {dimensions = array<i32: 0>} : vector<8x8xi32>
      %63 = tpu.iota {dimensions = array<i32: 1>} : vector<8x8xi32>
      %64 = arith.cmpi eq, %62, %63 : vector<8x8xi32>
      %cst_46 = arith.constant 0.000000e+00 : f32
      %65 = vector.shape_cast %61 : vector<8x1xf32> to vector<8x1xf32>
      %66 = vector.broadcast %65 : vector<8x1xf32> to vector<8x8xf32>
      %67 = vector.broadcast %cst_46 : f32 to vector<8x8xf32>
      %68 = arith.select %64, %66, %67 : vector<8x8xi1>, vector<8x8xf32>
      %cst_47 = arith.constant dense<0.000000e+00> : vector<8xf32>
      %69 = vector.multi_reduction <add>, %68, %cst_47 [0] : vector<8x8xf32> to vector<8xf32>
      %70 = vector.shape_cast %69 : vector<8xf32> to vector<1x8xf32>
      %c0_48 = arith.constant 0 : index
      %c0_49 = arith.constant 0 : index
      %71 = vector.load %arg3[%c0_48, %c0_49] : memref<8x1xi32, #tpu.memory_space<vmem>>, vector<8x1xi32>
      %72 = arith.sitofp %71 : vector<8x1xi32> to vector<8x1xf32>
      %cst_50 = arith.constant 0.000000e+00 : f32
      %73 = vector.shape_cast %72 : vector<8x1xf32> to vector<8x1xf32>
      %74 = vector.broadcast %73 : vector<8x1xf32> to vector<8x8xf32>
      %75 = vector.broadcast %cst_50 : f32 to vector<8x8xf32>
      %76 = arith.select %64, %74, %75 : vector<8x8xi1>, vector<8x8xf32>
      %cst_51 = arith.constant dense<0.000000e+00> : vector<8xf32>
      %77 = vector.multi_reduction <add>, %76, %cst_51 [0] : vector<8x8xf32> to vector<8xf32>
      %78 = vector.shape_cast %77 : vector<8xf32> to vector<1x8xf32>
      %79 = vector.broadcast %72 : vector<8x1xf32> to vector<8x8xf32>
      %80 = vector.broadcast %78 : vector<1x8xf32> to vector<8x8xf32>
      %81 = arith.cmpf oeq, %79, %80 : vector<8x8xf32>
      %82 = vector.broadcast %61 : vector<8x1xf32> to vector<8x8xf32>
      %83 = vector.broadcast %70 : vector<1x8xf32> to vector<8x8xf32>
      %84 = arith.addf %82, %83 : vector<8x8xf32>
      %cst_52 = arith.constant 2.000000e+00 : f32
      %85 = vector.broadcast %cst_52 : f32 to vector<8x8xf32>
      %86 = arith.mulf %85, %58 : vector<8x8xf32>
      %87 = arith.subf %84, %86 : vector<8x8xf32>
      %cst_53 = arith.constant 0.000000e+00 : f32
      %88 = vector.broadcast %cst_53 : f32 to vector<8x8xf32>
      %89 = arith.maximumf %87, %88 : vector<8x8xf32>
      %cst_54 = arith.constant -3.000000e+38 : f32
      %90 = vector.broadcast %cst_54 : f32 to vector<8x8xf32>
      %91 = arith.select %81, %89, %90 : vector<8x8xi1>, vector<8x8xf32>
      %cst_55 = arith.constant dense<0xFF800000> : vector<8xf32>
      %92 = vector.multi_reduction <maximumf>, %91, %cst_55 [1] : vector<8x8xf32> to vector<8xf32>
      %93 = vector.shape_cast %92 : vector<8xf32> to vector<8x1xf32>
      %cst_56 = arith.constant 3.000000e+38 : f32
      %94 = vector.broadcast %cst_56 : f32 to vector<8x8xf32>
      %95 = arith.select %81, %94, %89 : vector<8x8xi1>, vector<8x8xf32>
      %cst_57 = arith.constant dense<0x7F800000> : vector<8xf32>
      %96 = vector.multi_reduction <minimumf>, %95, %cst_57 [1] : vector<8x8xf32> to vector<8xf32>
      %97 = vector.shape_cast %96 : vector<8xf32> to vector<8x1xf32>
      %cst_58 = arith.constant 9.99999996E-13 : f32
      %98 = vector.broadcast %cst_58 : f32 to vector<8x1xf32>
      %99 = arith.addf %93, %98 : vector<8x1xf32>
      %100 = math.sqrt %99 : vector<8x1xf32>
      %cst_59 = arith.constant 9.99999996E-13 : f32
      %101 = vector.broadcast %cst_59 : f32 to vector<8x1xf32>
      %102 = arith.addf %97, %101 : vector<8x1xf32>
      %103 = math.sqrt %102 : vector<8x1xf32>
      %104 = arith.subf %100, %103 : vector<8x1xf32>
      %cst_60 = arith.constant 3.000000e-01 : f32
      %105 = vector.broadcast %cst_60 : f32 to vector<8x1xf32>
      %106 = arith.addf %104, %105 : vector<8x1xf32>
      %cst_61 = arith.constant 0.000000e+00 : f32
      %107 = vector.broadcast %cst_61 : f32 to vector<8x1xf32>
      %108 = arith.maximumf %106, %107 : vector<8x1xf32>
      %109 = vector.shape_cast %108 : vector<8x1xf32> to vector<1x8x1xf32>
      %cst_62 = arith.constant dense<0.000000e+00> : vector<1xf32>
      %110 = vector.multi_reduction <add>, %109, %cst_62 [1, 2] : vector<1x8x1xf32> to vector<1xf32>
      %111 = vector.shape_cast %110 : vector<1xf32> to vector<1x1x1xf32>
      %112 = vector.extract %111[0, 0, 0] : f32 from vector<1x1x1xf32>
      %cst_63 = arith.constant 8.000000e+00 : f32
      %113 = arith.divf %112, %cst_63 : f32
      %c0_64 = arith.constant 0 : index
      %114 = memref.load %arg9[%c0_64] : memref<1xf32, #tpu.memory_space<smem>>
      memref.store %113, %arg9[%c0_64] : memref<1xf32, #tpu.memory_space<smem>>
    } else {
    }
    %c0 = arith.constant 0 : index
    %c0_1 = arith.constant 0 : index
    %3 = vector.load %arg2[%c0, %c0_1] : memref<8x128xf32, #tpu.memory_space<vmem>>, vector<8x128xf32>
    %c128_i32 = arith.constant 128 : i32
    %4 = arith.muli %arg0, %c128_i32 : i32
    %5 = tpu.iota {dimensions = array<i32: 1>} : vector<8x128xi32>
    %6 = vector.broadcast %4 : i32 to vector<8x128xi32>
    %7 = arith.addi %6, %5 : vector<8x128xi32>
    %c16_i32 = arith.constant 16 : i32
    %8 = vector.broadcast %c16_i32 : i32 to vector<8x128xi32>
    %9 = arith.cmpi slt, %7, %8 : vector<8x128xi32>
    %cst = arith.constant -1.000000e+30 : f32
    %10 = vector.broadcast %cst : f32 to vector<8x128xf32>
    %11 = arith.select %9, %3, %10 : vector<8x128xi1>, vector<8x128xf32>
    %cst_2 = arith.constant 0.000000e+00 : f32
    %12 = vector.broadcast %cst_2 : f32 to vector<8x128xf32>
    %13 = arith.select %9, %3, %12 : vector<8x128xi1>, vector<8x128xf32>
    %cst_3 = arith.constant dense<0xFF800000> : vector<8xf32>
    %14 = vector.multi_reduction <maximumf>, %11, %cst_3 [1] : vector<8x128xf32> to vector<8xf32>
    %15 = vector.shape_cast %14 : vector<8xf32> to vector<8x1xf32>
    %c0_4 = arith.constant 0 : index
    %c0_5 = arith.constant 0 : index
    %16 = vector.load %arg5[%c0_4, %c0_5] : memref<8x1xf32, #tpu.memory_space<vmem>>, vector<8x1xf32>
    %17 = arith.maximumf %16, %15 : vector<8x1xf32>
    %c0_6 = arith.constant 0 : index
    %c0_7 = arith.constant 0 : index
    %18 = vector.load %arg5[%c0_6, %c0_7] : memref<8x1xf32, #tpu.memory_space<vmem>>, vector<8x1xf32>
    %19 = arith.subf %18, %17 : vector<8x1xf32>
    %20 = math.exp %19 : vector<8x1xf32>
    %21 = vector.broadcast %17 : vector<8x1xf32> to vector<8x128xf32>
    %22 = arith.subf %11, %21 : vector<8x128xf32>
    %23 = math.exp %22 : vector<8x128xf32>
    %c0_8 = arith.constant 0 : index
    %c0_9 = arith.constant 0 : index
    %24 = vector.load %arg6[%c0_8, %c0_9] : memref<8x1xf32, #tpu.memory_space<vmem>>, vector<8x1xf32>
    %25 = arith.mulf %20, %24 : vector<8x1xf32>
    %cst_10 = arith.constant dense<0.000000e+00> : vector<8xf32>
    %26 = vector.multi_reduction <add>, %23, %cst_10 [1] : vector<8x128xf32> to vector<8xf32>
    %27 = vector.shape_cast %26 : vector<8xf32> to vector<8x1xf32>
    %28 = arith.addf %25, %27 : vector<8x1xf32>
    %c0_11 = arith.constant 0 : index
    %c0_12 = arith.constant 0 : index
    %29 = vector.load %arg6[%c0_11, %c0_12] : memref<8x1xf32, #tpu.memory_space<vmem>>, vector<8x1xf32>
    tpu.vector_store %arg6[%c0_11, %c0_12], %28 {strides = array<i32>} : memref<8x1xf32, #tpu.memory_space<vmem>>, vector<8x1xf32>,
    %c0_13 = arith.constant 0 : index
    %c0_14 = arith.constant 0 : index
    %30 = vector.load %arg5[%c0_13, %c0_14] : memref<8x1xf32, #tpu.memory_space<vmem>>, vector<8x1xf32>
    tpu.vector_store %arg5[%c0_13, %c0_14], %17 {strides = array<i32>} : memref<8x1xf32, #tpu.memory_space<vmem>>, vector<8x1xf32>,
    %c0_15 = arith.constant 0 : index
    %c0_16 = arith.constant 0 : index
    %31 = vector.load %arg7[%c0_15, %c0_16] : memref<8x1xf32, #tpu.memory_space<vmem>>, vector<8x1xf32>
    %cst_17 = arith.constant dense<0.000000e+00> : vector<8xf32>
    %32 = vector.multi_reduction <add>, %13, %cst_17 [1] : vector<8x128xf32> to vector<8xf32>
    %33 = vector.shape_cast %32 : vector<8xf32> to vector<8x1xf32>
    %34 = arith.addf %31, %33 : vector<8x1xf32>
    %c0_18 = arith.constant 0 : index
    %c0_19 = arith.constant 0 : index
    %35 = vector.load %arg7[%c0_18, %c0_19] : memref<8x1xf32, #tpu.memory_space<vmem>>, vector<8x1xf32>
    tpu.vector_store %arg7[%c0_18, %c0_19], %34 {strides = array<i32>} : memref<8x1xf32, #tpu.memory_space<vmem>>, vector<8x1xf32>,
    %c0_20 = arith.constant 0 : index
    %c0_21 = arith.constant 0 : index
    %36 = vector.load %arg3[%c0_20, %c0_21] : memref<8x1xi32, #tpu.memory_space<vmem>>, vector<8x1xi32>
    %c0_22 = arith.constant 0 : index
    %c0_23 = arith.constant 0 : index
    %37 = vector.load %arg8[%c0_22, %c0_23] : memref<8x1xf32, #tpu.memory_space<vmem>>, vector<8x1xf32>
    %38 = vector.broadcast %36 : vector<8x1xi32> to vector<8x128xi32>
    %39 = arith.cmpi eq, %7, %38 : vector<8x128xi32>
    %cst_24 = arith.constant 0.000000e+00 : f32
    %40 = vector.broadcast %cst_24 : f32 to vector<8x128xf32>
    %41 = arith.select %39, %13, %40 : vector<8x128xi1>, vector<8x128xf32>
    %cst_25 = arith.constant dense<0.000000e+00> : vector<8xf32>
    %42 = vector.multi_reduction <add>, %41, %cst_25 [1] : vector<8x128xf32> to vector<8xf32>
    %43 = vector.shape_cast %42 : vector<8xf32> to vector<8x1xf32>
    %44 = arith.addf %37, %43 : vector<8x1xf32>
    %c0_26 = arith.constant 0 : index
    %c0_27 = arith.constant 0 : index
    %45 = vector.load %arg8[%c0_26, %c0_27] : memref<8x1xf32, #tpu.memory_space<vmem>>, vector<8x1xf32>
    tpu.vector_store %arg8[%c0_26, %c0_27], %44 {strides = array<i32>} : memref<8x1xf32, #tpu.memory_space<vmem>>, vector<8x1xf32>,
    %c0_i32_28 = arith.constant 0 : i32
    %46 = arith.cmpi eq, %arg0, %c0_i32_28 : i32
    %47 = arith.extui %46 : i1 to i32
    %c0_i32_29 = arith.constant 0 : i32
    %48 = arith.cmpi ne, %47, %c0_i32_29 : i32
    scf.if %48 {
      %c0_30 = arith.constant 0 : index
      %c0_31 = arith.constant 0 : index
      %49 = vector.load %arg5[%c0_30, %c0_31] : memref<8x1xf32, #tpu.memory_space<vmem>>, vector<8x1xf32>
      %c0_32 = arith.constant 0 : index
      %c0_33 = arith.constant 0 : index
      %50 = vector.load %arg6[%c0_32, %c0_33] : memref<8x1xf32, #tpu.memory_space<vmem>>, vector<8x1xf32>
      %51 = math.log %50 : vector<8x1xf32>
      %52 = arith.addf %49, %51 : vector<8x1xf32>
      %c0_34 = arith.constant 0 : index
      %c0_35 = arith.constant 0 : index
      %53 = vector.load %arg8[%c0_34, %c0_35] : memref<8x1xf32, #tpu.memory_space<vmem>>, vector<8x1xf32>
      %cst_36 = arith.constant 0.899999976 : f32
      %54 = vector.broadcast %cst_36 : f32 to vector<8x1xf32>
      %55 = arith.mulf %54, %53 : vector<8x1xf32>
      %56 = arith.subf %52, %55 : vector<8x1xf32>
      %c0_37 = arith.constant 0 : index
      %c0_38 = arith.constant 0 : index
      %57 = vector.load %arg7[%c0_37, %c0_38] : memref<8x1xf32, #tpu.memory_space<vmem>>, vector<8x1xf32>
      %cst_39 = arith.constant 6.250000e-03 : f32
      %58 = vector.broadcast %cst_39 : f32 to vector<8x1xf32>
      %59 = arith.mulf %58, %57 : vector<8x1xf32>
      %60 = arith.subf %56, %59 : vector<8x1xf32>
      %61 = vector.shape_cast %60 : vector<8x1xf32> to vector<1x8x1xf32>
      %cst_40 = arith.constant dense<0.000000e+00> : vector<1xf32>
      %62 = vector.multi_reduction <add>, %61, %cst_40 [1, 2] : vector<1x8x1xf32> to vector<1xf32>
      %63 = vector.shape_cast %62 : vector<1xf32> to vector<1x1x1xf32>
      %64 = vector.extract %63[0, 0, 0] : f32 from vector<1x1x1xf32>
      %cst_41 = arith.constant 8.000000e+00 : f32
      %65 = arith.divf %64, %cst_41 : f32
      %c0_42 = arith.constant 0 : index
      %66 = memref.load %arg9[%c0_42] : memref<1xf32, #tpu.memory_space<smem>>
      %cst_43 = arith.constant 1.000000e+00 : f32
      %67 = arith.mulf %cst_43, %65 : f32
      %cst_44 = arith.constant 1.000000e+00 : f32
      %68 = arith.mulf %cst_44, %66 : f32
      %69 = arith.addf %67, %68 : f32
      %c0_45 = arith.constant 0 : index
      %70 = memref.load %arg4[%c0_45] : memref<3xf32, #tpu.memory_space<smem>>
      memref.store %69, %arg4[%c0_45] : memref<3xf32, #tpu.memory_space<smem>>
      %c1 = arith.constant 1 : index
      %71 = memref.load %arg4[%c1] : memref<3xf32, #tpu.memory_space<smem>>
      memref.store %65, %arg4[%c1] : memref<3xf32, #tpu.memory_space<smem>>
      %c2 = arith.constant 2 : index
      %72 = memref.load %arg4[%c2] : memref<3xf32, #tpu.memory_space<smem>>
      memref.store %66, %arg4[%c2] : memref<3xf32, #tpu.memory_space<smem>>
    } else {
    }
    return
  }
  func.func @transform_0(%arg0: i32) -> (i32, i32) {
    %c0_i32 = arith.constant 0 : i32
    %c0_i32_0 = arith.constant 0 : i32
    %c0_i32_1 = arith.constant 0 : i32
    return %c0_i32, %c0_i32_0 : i32, i32
  }
  func.func @transform_1(%arg0: i32) -> (i32, i32) {
    %c0_i32 = arith.constant 0 : i32
    %c0_i32_0 = arith.constant 0 : i32
    return %c0_i32, %arg0 : i32, i32
  }
  func.func @transform_2(%arg0: i32) -> (i32, i32) {
    %c0_i32 = arith.constant 0 : i32
    %c0_i32_0 = arith.constant 0 : i32
    %c0_i32_1 = arith.constant 0 : i32
    return %c0_i32, %c0_i32_0 : i32, i32
  }
  func.func @transform_3(%arg0: i32) -> i32 {
    %c0_i32 = arith.constant 0 : i32
    %c0_i32_0 = arith.constant 0 : i32
    return %c0_i32 : i32
  }
}

</mosaic_0001>

<llo_original>
// kernel: tpu_custom_call.1
$region0: #{tpu_custom_call.1}
  #allocation0 [shape = 'u32[]', space=smem, size = 0x4, offset = 0x4, fixed_abs, tag = 'smem constant byte address 0x4 - core index']
  #allocation1 [shape = 'u32[144,128]{1,0:T(1,128)}', space=vmem, size = 0x12000, scoped, tag = 'internal scratch']
  #allocation2 [shape = 'f32[8,1]{1,0:T(8,128)}', space=vmem, size = 0x1000, scoped, tag = 'scratch operand']
  #allocation3 [shape = 'f32[8,1]{1,0:T(8,128)}', space=vmem, size = 0x1000, scoped, tag = 'scratch operand']
  #allocation4 [shape = 'f32[8,1]{1,0:T(8,128)}', space=vmem, size = 0x1000, scoped, tag = 'scratch operand']
  #allocation5 [shape = 'f32[8,1]{1,0:T(8,128)}', space=vmem, size = 0x1000, scoped, tag = 'scratch operand']
  #allocation6 [shape = 'f32[1]{0:T(128)}', space=smem, size = 0x200, scoped, tag = 'scratch operand']
  %s0 = inlined_call_operand.vmem [shape: f32[8,32], index: 0, kind: input, shape index: {}]
  %s1 = inlined_call_operand.hbm [shape: f32[8,16], index: 1, kind: input, shape index: {}]
  %s2 = inlined_call_operand.vmem [shape: s32[8,1], index: 2, kind: input, shape index: {}]
  %s3 = inlined_call_operand.hbm [shape: f32[3], index: 3, kind: output, shape index: {}]
  %s4 = sld [smem:[#allocation0]]
  $region34: #{tpu_custom_call.1} parent=0
    _
  %s6 = ssub.s32 1, %s4
  %s7 = scalar_select 0, %s6, %s4
  $region1: #{tpu_custom_call.1} parent=0
    #allocation7 [shape = 'u8[4096]{0}', space=vmem, size = 0x1000, scoped, tag = 'input window, operand 1, single buffered']
    #allocation8 [shape = 's32[1]{0}', space=sflag, size = 0x4, scoped, tag = 'scoped memory for tpu_custom_call.1']
    #allocation9 [shape = 's32[1]{0}', space=sflag, size = 0x4, scoped, tag = 'scoped memory for tpu_custom_call.1']
    #allocation10 [shape = 'u8[512]{0}', space=smem, size = 0x200, scoped, tag = 'output window, operand 0, single buffered']
    %8 = vsyncpa [#allocation8], 0
    %9 = vsyncpa [#allocation9], 0
    // Predicated region
    $region2: #{tpu_custom_call.1} parent=1 // pred_check
      _
    $region3: #{tpu_custom_call.1} parent=1 // pred_check_branch
      %11 = sbr.rel (0) target = $region5
    $region4: #{tpu_custom_call.1} parent=1 // pred_region
      _
    $region5: #{tpu_custom_call.1} parent=1 // pred_fallthru
      _
    // Predicated region
    $region6: #{tpu_custom_call.1} parent=1 // pred_check
      _
    $region7: #{tpu_custom_call.1} parent=1 // pred_check_branch
      %13 = sbr.rel (0) target = $region9
    $region8: #{tpu_custom_call.1} parent=1 // pred_region
      %s15 = ssub.s32 128, 128
      %16 = vsyncadd [#allocation8], %s15
      %s18 = sshll.u32 [#allocation7], 4
      %s19 = int_to_ptr.vmem [resolvable:$true] %s18
      %21 = dma.hbm_to_vmem [thread:$0]  %s1, 128, %s19, [#allocation8]
    $region9: #{tpu_custom_call.1} parent=1 // pred_fallthru
      _
    // Predicated region
    $region10: #{tpu_custom_call.1} parent=1 // pred_check
      _
    $region11: #{tpu_custom_call.1} parent=1 // pred_check_branch
      %23 = sbr.rel (0) target = $region13
    $region12: #{tpu_custom_call.1} parent=1 // pred_region
      _
    $region13: #{tpu_custom_call.1} parent=1 // pred_fallthru
      _
    // Predicated region
    $region14: #{tpu_custom_call.1} parent=1 // pred_check
      _
    $region15: #{tpu_custom_call.1} parent=1 // pred_check_branch
      %25 = sbr.rel (0) target = $region17
    $region16: #{tpu_custom_call.1} parent=1 // pred_region
      %26 = dma.done [#allocation8], 128
    $region17: #{tpu_custom_call.1} parent=1 // pred_fallthru
      _
    %p27 = scmp.eq.s32.totalorder 0, 0
    // Predicated region
    $region18: #{tpu_custom_call.1} parent=1 // pred_check
      %p28 = pneg %p27
    $region19: #{tpu_custom_call.1} parent=1 // pred_check_branch
      %30 = sbr.rel (%p28) target = $region21
    $region20: #{tpu_custom_call.1} parent=1 // pred_region
      %vm31 = vcmask 7168
      %32 = vst.msk [vmem:[#allocation2] sm:$0xff] %vm31, -1e+30
      %33 = vst.msk [vmem:[#allocation3] sm:$0xff] %vm31, 0.0
      %34 = vst.msk [vmem:[#allocation4] sm:$0xff] %vm31, 0.0
      %35 = vst.msk [vmem:[#allocation5] sm:$0xff] %vm31, 0.0
      %v36 = vld [vmem:[%s0] sm:$0xff]
      %vm37 = vcmask 261120
      %v39 = vsel %vm37, %v36, 0
      %41 = vmatprep.subr.mxu0 0.0
      %42 = vmatpush1.xpose.msra.mxu0 %v39
      %43 = vmatprep.subr.mxu0 0.0
      %44 = vmatpush1.xpose.msra.mxu0 0.0
      %45 = vmatprep.subr.mxu0 0.0
      %46 = vmatpush1.xpose.msra.mxu0 0.0
      %47 = vmatprep.subr.mxu0 0.0
      %48 = vmatpush1.xpose.msra.mxu0 0.0
      %49 = vmatprep.subr.mxu0 0.0
      %50 = vmatpush1.xpose.msra.mxu0 0.0
      %51 = vmatprep.subr.mxu0 0.0
      %52 = vmatpush1.xpose.msra.mxu0 0.0
      %53 = vmatprep.subr.mxu0 0.0
      %54 = vmatpush1.xpose.msra.mxu0 0.0
      %55 = vmatprep.subr.mxu0 0.0
      %56 = vmatpush1.xpose.msra.mxu0 0.0
      %57 = vmatprep.subr.mxu0 0.0
      %58 = vmatpush1.xpose.msra.mxu0 0.0
      %59 = vmatprep.subr.mxu0 0.0
      %60 = vmatpush1.xpose.msra.mxu0 0.0
      %61 = vmatprep.subr.mxu0 0.0
      %62 = vmatpush1.xpose.msra.mxu0 0.0
      %63 = vmatprep.subr.mxu0 0.0
      %64 = vmatpush1.xpose.msra.mxu0 0.0
      %65 = vmatprep.subr.mxu0 0.0
      %66 = vmatpush1.xpose.msra.mxu0 0.0
      %67 = vmatprep.subr.mxu0 0.0
      %68 = vmatpush1.xpose.msra.mxu0 0.0
      %69 = vmatprep.subr.mxu0 0.0
      %70 = vmatpush1.xpose.msra.mxu0 0.0
      %71 = vmatprep.subr.mxu0 0.0
      %72 = vmatpush1.xpose.msra.mxu0 0.0
      %73 = vmatprep.subr.mxu0 0.0
      %74 = vmatpush1.xpose.msra.mxu0 0.0
      %75 = vmatprep.subr.mxu0 0.0
      %76 = vmatpush1.xpose.msra.mxu0 0.0
      %77 = vmatprep.subr.mxu0 0.0
      %78 = vmatpush1.xpose.msra.mxu0 0.0
      %79 = vmatprep.subr.mxu0 0.0
      %80 = vmatpush1.xpose.msra.mxu0 0.0
      %81 = vmatprep.subr.mxu0 0.0
      %82 = vmatpush1.xpose.msra.mxu0 0.0
      %83 = vmatprep.subr.mxu0 0.0
      %84 = vmatpush1.xpose.msra.mxu0 0.0
      %85 = vmatprep.subr.mxu0 0.0
      %86 = vmatpush1.xpose.msra.mxu0 0.0
      %87 = vmatprep.subr.mxu0 0.0
      %88 = vmatpush1.xpose.msra.mxu0 0.0
      %89 = vmatprep.subr.mxu0 0.0
      %90 = vmatpush1.xpose.msra.mxu0 0.0
      %91 = vmatprep.subr.mxu0 0.0
      %92 = vmatpush1.xpose.msra.mxu0 0.0
      %93 = vmatprep.subr.mxu0 0.0
      %94 = vmatpush1.xpose.msra.mxu0 0.0
      %95 = vmatprep.subr.mxu0 0.0
      %96 = vmatpush1.xpose.msra.mxu0 0.0
      %97 = vmatprep.subr.mxu0 0.0
      %98 = vmatpush1.xpose.msra.mxu0 0.0
      %99 = vmatprep.subr.mxu0 0.0
      %100 = vmatpush1.xpose.msra.mxu0 0.0
      %101 = vmatprep.subr.mxu0 0.0
      %102 = vmatpush1.xpose.msra.mxu0 0.0
      %103 = vmatprep.subr.mxu0 0.0
      %104 = vmatpush1.xpose.msra.mxu0 0.0
      %105 = vmatprep.mubr.f32.mxu0 0.0
      %106 = vmatmul.mubr.f32.gmra.mrb[0].mxu0 %v39
      %v107 = vpop.f32.mrb[0].mxu0
      %v108 = vadd.f32 0.0, %v107
      %v109 = vpop.f32.mrb[0].mxu0
      %110 = vdwg.mxu0
      %v111 = vmul.f32 %v36, %v36
      %v112 = vsel %vm37, %v111, 0.0
      %113 = vadd.xlane.f32.xlu0 %v112
      %v114 = vpop.xlane.xlu0 %113
      %v115 = vlaneseq
      %v116 = vshrl.u32 %v115, 7
      %v117 = vlaneseq
      %v118 = vand.u32 %v117, 127
      %vm119 = vcmp.eq.s32.totalorder %v116, %v118
      %v120 = vsel %vm119, %v114, 0.0
      %vm121 = vcmask 64512
      %v122 = vsel %vm121, %v120, 0.0
      %v123 = vrot.slane %v122, 4
      %v124 = vadd.f32 %v122, %v123
      %v125 = vrot.slane %v124, 2
      %v126 = vadd.f32 %v124, %v125
      %v127 = vrot.slane %v126, 1
      %v128 = vadd.f32 %v126, %v127
      %v129 = vld [vmem:[%s2] sm:$0xff]
      %v130 = vcvt.s32.f32 %v129
      %132 = vset.pattern.permute.xlu0 0
      %133 = vperm.xlu0 %132, %v130
      %v134 = vpop.permute.xlu0 %133
      %v136 = vsel %vm119, %v134, 0.0
      %v137 = vsel %vm121, %v136, 0.0
      %v138 = vrot.slane %v137, 4
      %v139 = vadd.f32 %v137, %v138
      %v140 = vrot.slane %v139, 2
      %v141 = vadd.f32 %v139, %v140
      %v142 = vrot.slane %v141, 1
      %v143 = vadd.f32 %v141, %v142
      %vm144 = vcmp.eq.f32.partialorder %v134, %v143
      %v145 = vadd.f32 %v114, %v128
      %v146 = vmul.f32 %v108, 2.0
      %v147 = vsub.f32 %v145, %v146
      %v148 = vmax.f32 %v147, 0.0
      %v149 = vsel %vm144, %v148, -3e+38
      %v150 = vsel %vm121, %v149, -inf
      %151 = vmax.xlane.f32.xlu0 %v150
      %v152 = vpop.xlane.xlu0 %151
      %v153 = vsel %vm144, 3e+38, %v148
      %v154 = vsel %vm121, %v153, inf
      %155 = vmin.xlane.f32.xlu0 %v154
      %v156 = vpop.xlane.xlu0 %155
      %v157 = vadd.f32 %v152, 1e-12
      %v158 = vrsqrt.pop %v157
      %v159 = vmul.f32 %v157, %v158
      %vm160 = vcmp.eq.f32.partialorder %v157, inf
      %v161 = vsel %vm160, %v157, %v159
      %vm162 = vcmp.eq.f32.partialorder %v157, 0.0
      %v163 = vand.u32 %v157, 2147483648
      %v164 = vsel %vm162, %v163, %v161
      %v165 = vadd.f32 %v156, 1e-12
      %v166 = vrsqrt.pop %v165
      %v167 = vmul.f32 %v165, %v166
      %vm168 = vcmp.eq.f32.partialorder %v165, inf
      %v169 = vsel %vm168, %v165, %v167
      %vm170 = vcmp.eq.f32.partialorder %v165, 0.0
      %v171 = vand.u32 %v165, 2147483648
      %v172 = vsel %vm170, %v171, %v169
      %v173 = vsub.f32 %v164, %v172
      %v174 = vadd.f32 %v173, 0.3
      %v175 = vmax.f32 %v174, 0.0
      %v176 = vsel %vm31, %v175, 0.0
      %177 = vadd.xlane.f32.xlu0 %v176
      %v178 = vpop.xlane.xlu0 %177
      %v179 = vrot.slane %v178, 4
      %v180 = vadd.f32 %v178, %v179
      %v181 = vrot.slane %v180, 2
      %v182 = vadd.f32 %v180, %v181
      %v183 = vrot.slane %v182, 1
      %v184 = vadd.f32 %v182, %v183
      %s185 = vtos %v184
      %v186 = vrcp.pop 8.0
      %s187 = vtos %v186
      %s188 = smul.f32 %s185, %s187
      %s189 = scalar_lea.smem [#allocation6], 0
      %190 = sst [smem:[%s189]] %s188
    $region21: #{tpu_custom_call.1} parent=1 // pred_fallthru
      _
    %v191 = vld [vmem:[#allocation7] sm:$0xff]
    %s192 = smul.u32 0, 128
    %v193 = vlaneseq
    %v194 = vand.u32 %v193, 127
    %v195 = vstv %s192
    %v196 = vadd.s32 %v195, %v194
    %vm197 = vcmp.lt.s32.totalorder %v196, 16
    %v198 = vsel %vm197, %v191, -1e+30
    %v199 = vsel %vm197, %v191, 0.0
    %200 = vmax.xlane.f32.xlu0 %v198
    %v201 = vpop.xlane.xlu0 %200
    %v202 = vld [vmem:[#allocation2] sm:$0xff]
    %v203 = vmax.f32 %v202, %v201
    %v204 = vsub.f32 %v202, %v203
    %v205 = vmul.f32 %v204, 1.442695
    %v206 = vpow.pop %v205
    %208 = vset.pattern.permute.xlu0 0
    %209 = vperm.xlu0 %208, %v203
    %v210 = vpop.permute.xlu0 %209
    %v212 = vsub.f32 %v198, %v210
    %v213 = vmul.f32 %v212, 1.442695
    %v214 = vpow.pop %v213
    %v215 = vld [vmem:[#allocation3] sm:$0xff]
    %v216 = vmul.f32 %v206, %v215
    %217 = vadd.xlane.f32.xlu0 %v214
    %v218 = vpop.xlane.xlu0 %217
    %v219 = vadd.f32 %v216, %v218
    %vm220 = vcmask 7168
    %221 = vst.msk [vmem:[#allocation3] sm:$0xff] %vm220, %v219
    %222 = vst.msk [vmem:[#allocation2] sm:$0xff] %vm220, %v203
    %v223 = vld [vmem:[#allocation4] sm:$0xff]
    %224 = vadd.xlane.f32.xlu0 %v199
    %v225 = vpop.xlane.xlu0 %224
    %v226 = vadd.f32 %v223, %v225
    %227 = vst.msk [vmem:[#allocation4] sm:$0xff] %vm220, %v226
    %v228 = vld [vmem:[%s2] sm:$0xff]
    %v229 = vld [vmem:[#allocation5] sm:$0xff]
    %230 = vset.pattern.permute.xlu0 0
    %231 = vperm.xlu0 %230, %v228
    %v232 = vpop.permute.xlu0 %231
    %vm233 = vcmp.eq.s32.totalorder %v196, %v232
    %v234 = vsel %vm233, %v199, 0.0
    %235 = vadd.xlane.f32.xlu0 %v234
    %v236 = vpop.xlane.xlu0 %235
    %v237 = vadd.f32 %v229, %v236
    %238 = vst.msk [vmem:[#allocation5] sm:$0xff] %vm220, %v237
    // Predicated region
    $region22: #{tpu_custom_call.1} parent=1 // pred_check
      %p239 = pneg %p27
    $region23: #{tpu_custom_call.1} parent=1 // pred_check_branch
      %241 = sbr.rel (%p239) target = $region25
    $region24: #{tpu_custom_call.1} parent=1 // pred_region
      %v242 = vld [vmem:[#allocation2] sm:$0xff]
      %v243 = vld [vmem:[#allocation3] sm:$0xff]
      %v244 = vlog2.pop %v243
      %v245 = vmul.f32 %v244, 0.6931472
      %v246 = vadd.f32 %v242, %v245
      %v247 = vld [vmem:[#allocation5] sm:$0xff]
      %v248 = vmul.f32 %v247, 0.9
      %v249 = vsub.f32 %v246, %v248
      %v250 = vld [vmem:[#allocation4] sm:$0xff]
      %v251 = vmul.f32 %v250, 0.00625
      %v252 = vsub.f32 %v249, %v251
      %v253 = vsel %vm220, %v252, 0.0
      %254 = vadd.xlane.f32.xlu0 %v253
      %v255 = vpop.xlane.xlu0 %254
      %v256 = vrot.slane %v255, 4
      %v257 = vadd.f32 %v255, %v256
      %v258 = vrot.slane %v257, 2
      %v259 = vadd.f32 %v257, %v258
      %v260 = vrot.slane %v259, 1
      %v261 = vadd.f32 %v259, %v260
      %s262 = vtos %v261
      %v263 = vrcp.pop 8.0
      %s264 = vtos %v263
      %s265 = smul.f32 %s262, %s264
      %s266 = sld [smem:[#allocation6]]
      %s267 = sadd.f32 %s265, %s266
      %s268 = scalar_lea.smem [#allocation10], 0
      %269 = sst [smem:[%s268]] %s267
      %s270 = scalar_lea.smem [#allocation10], 1
      %271 = sst [smem:[%s270]] %s265
      %s272 = scalar_lea.smem [#allocation10], 2
      %273 = sst [smem:[%s272]] %s266
    $region25: #{tpu_custom_call.1} parent=1 // pred_fallthru
      _
    // Predicated region
    $region26: #{tpu_custom_call.1} parent=1 // pred_check
      _
    $region27: #{tpu_custom_call.1} parent=1 // pred_check_branch
      %275 = sbr.rel (0) target = $region29
    $region28: #{tpu_custom_call.1} parent=1 // pred_region
      %s277 = ssub.s32 16, 16
      %278 = vsyncadd [#allocation9], %s277
      %281 = dma.smem_to_hbm [#allocation10], 16, %s3, [#allocation9]
    $region29: #{tpu_custom_call.1} parent=1 // pred_fallthru
      _
    // Predicated region
    $region30: #{tpu_custom_call.1} parent=1 // pred_check
      _
    $region31: #{tpu_custom_call.1} parent=1 // pred_check_branch
      %283 = sbr.rel (0) target = $region33
    $region32: #{tpu_custom_call.1} parent=1 // pred_region
      %284 = dma.done [#allocation9], 16
    $region33: #{tpu_custom_call.1} parent=1 // pred_fallthru
      _
    %285 = sfence
    %286 = vsyncpa [#allocation8], 1
    %287 = vsyncpa [#allocation9], 1

</llo_original>
